<compile_context>
chip_gen: v7x
topology: tpu7x:2x2x1
jax: 0.10.0
libtpu: 0.0.40
codegen_flags: <defaults>
</compile_context>

<pallas_src>
import functools
import math

import jax
import jax.numpy as jnp
from jax.experimental import pallas as pl
from jax.experimental.pallas import tpu as pltpu


def _round_up(x: int, m: int) -> int:
    return ((x + m - 1) // m) * m


def _cdiv(a: int, b: int) -> int:
    return -(-a // b)


def _vmem_capacity_bytes() -> int:
    """Per-generation physical VMEM (v5e/v6e: 128 MiB, v7x: 64 MiB per TC)."""
    try:
        info = pltpu.get_tpu_info()
        cap = getattr(info, "vmem_capacity_bytes", None)
        if cap:
            return int(cap)
    except Exception:
        pass
    return 64 << 20  # conservative fallback (v7x per-TC)


def _label_smoothing_kernel(pred_ref, tv_ref, out_ref, *,
                            smoothing: float, use_kl: bool,
                            const_entropy: float, use_mxu_rowsum: bool):
    x = pred_ref[...]                                   # [tB, C], native dtype
    tB, C = x.shape
    f32 = jnp.float32

    # Stable logsumexp. max and (x - m) stay in the native dtype (packed bf16 VALU
    # on v6e/v7x; exact max, <=1 bf16 ulp on the subtract); exp/sum/log in f32.
    m = jnp.max(x, axis=-1, keepdims=True)              # [tB, 1]
    e = jnp.exp((x - m).astype(f32))                    # [tB, C] f32
    lse = m.astype(f32) + jnp.log(jnp.sum(e, axis=-1, keepdims=True))

    tv = tv_ref[...]                                    # [tB, 2] int32: (target, valid)
    tgt = tv[:, 0:1]
    valid = tv[:, 1:2] > 0                              # [tB, 1] bool

    # Logit at the target class: mask + lane reduce (exactly one nonzero per row,
    # so the native-dtype sum is exact); no dense smoothed-dist array materialized.
    iota = jax.lax.broadcasted_iota(jnp.int32, (tB, C), 1)
    x_t = jnp.sum(jnp.where(iota == tgt, x, 0),
                  axis=-1, keepdims=True).astype(f32)   # [tB, 1]

    if use_mxu_rowsum:
        # Offload sum_c(x) to the otherwise-idle MXU: bf16 * 1.0 with f32
        # accumulation is numerically equivalent to the f32 VALU sum.
        ones_rhs = jnp.ones((C, 128), dtype=x.dtype)
        row_sum = jnp.dot(x, ones_rhs, preferred_element_type=f32)[:, 0:1]
    else:
        row_sum = jnp.sum(x, axis=-1, keepdims=True, dtype=f32)

    confidence = 1.0 - smoothing
    off_value = smoothing / (C - 1) if C > 1 else 0.0

    # sum_c(-dist_c * logp_c) = lse - off*sum_c(x) - (conf - off)*x_target
    per_row = lse - off_value * row_sum - (confidence - off_value) * x_t
    if use_kl:
        # sum_c dist*(log dist - logp) = const_entropy + cross-entropy term
        per_row = per_row + jnp.float32(const_entropy)

    # where-select (NOT multiply): inf/NaN produced by ignored or garbage
    # ragged-tail rows must not poison the partial sum (inf * 0 == NaN).
    loss_sum = jnp.sum(jnp.where(valid, per_row, 0.0))

    # Lane-dense full-block store of the per-tile partial sum.
    out_ref[...] = jnp.full(out_ref.shape, loss_sum, dtype=jnp.float32)


def _choose_tile_rows(B: int, C: int, itemsize: int, vmem_capacity: int) -> int:
    """Row tile sized so the f32-equivalent working set (input cast + exp + iota +
    mask temporaries) fits the generation's VMEM, while keeping >= ~8 grid steps
    when B allows (megacore + pipeline depth)."""
    row_align = max(8, 32 // max(itemsize, 1))           # 8 for f32, 16 for bf16
    if vmem_capacity >= (100 << 20):                     # v5e / v6e: 128 MiB
        f32_tile_budget = 16 << 20
    else:                                                # v7x: 64 MiB per TC
        f32_tile_budget = 6 << 20
    rows = (f32_tile_budget // max(C * 4, 1)) // row_align * row_align
    rows = max(row_align, rows)
    # cap so num_tiles >= ~8 when the batch is big enough
    rows_for_tiles = _round_up(max(1, _cdiv(B, 8)), row_align)
    rows = min(rows, rows_for_tiles)
    if rows >= B:
        return B      # single full-array block: always layout-legal, no ragged tail
    return max(row_align, rows)


def label_smoothing_loss(prediction, target, mask=None, *,
                         smoothing: float = 0.1,
                         use_kl: bool = False,
                         ignore_index: int = -100):
    """prediction: [B, C] float (any float dtype); target: [B] int;
    mask: optional [B] bool. Returns scalar f32 loss."""
    assert 0.0 <= smoothing < 1.0
    B, C = prediction.shape
    assert C > 1 or smoothing == 0.0, "smoothing/(C-1) undefined for C == 1"

    valid = target != ignore_index
    if mask is not None:
        valid = valid & mask

    itemsize = jnp.dtype(prediction.dtype).itemsize
    vmem_cap = _vmem_capacity_bytes()
    tB = _choose_tile_rows(B, C, itemsize, vmem_cap)
    num_tiles = _cdiv(B, tB)
    B_pad = num_tiles * tB

    # Only the tiny packed (target, valid) int32 side input is padded; the [B, C]
    # logits are read unpadded (ragged last tile is masked in-kernel via valid=0).
    tv = jnp.stack([target.astype(jnp.int32), valid.astype(jnp.int32)], axis=-1)
    if B_pad != B:
        tv = jnp.pad(tv, ((0, B_pad - B), (0, 0)))

    # MXU row-sum offload only when the ones-RHS stays small in VMEM.
    use_mxu_rowsum = (prediction.dtype == jnp.bfloat16
                      and C * 128 * itemsize <= (2 << 20))

    # Constant entropy term for the KL path (0*log 0 := 0, matching F.kl_div).
    const_entropy = 0.0
    if use_kl:
        conf = 1.0 - smoothing
        off = smoothing / (C - 1) if C > 1 else 0.0
        const_entropy = conf * math.log(conf)
        if off > 0.0:
            const_entropy += (C - 1) * off * math.log(off)

    # VMEM budget: double-buffered input tiles + ~4x f32-sized in-kernel
    # temporaries (exp result, iota, masked copy, slack for the un-fused x - m)
    # + MXU ones/output + small side inputs + headroom; capped per generation.
    f32_tile = tB * C * 4
    in_tile_bytes = tB * C * itemsize
    ones_bytes = (C * 128 * itemsize + tB * 128 * 4) if use_mxu_rowsum else 0
    small_bytes = 2 * (tB * 2 * 4) + 2 * (8 * 128 * 4)
    needed = 2 * in_tile_bytes + 4 * f32_tile + ones_bytes + small_bytes + (4 << 20)
    vmem_limit = int(min(max(needed, 16 << 20), int(vmem_cap * 0.9)))

    partials = pl.pallas_call(
        functools.partial(_label_smoothing_kernel,
                          smoothing=float(smoothing),
                          use_kl=bool(use_kl),
                          const_entropy=float(const_entropy),
                          use_mxu_rowsum=bool(use_mxu_rowsum)),
        out_shape=jax.ShapeDtypeStruct((num_tiles, 8, 128), jnp.float32),
        grid_spec=pltpu.PrefetchScalarGridSpec(
            num_scalar_prefetch=0,
            grid=(num_tiles,),
            in_specs=[
                pl.BlockSpec((tB, C), lambda i: (i, 0)),   # prediction tile (native dtype)
                pl.BlockSpec((tB, 2), lambda i: (i, 0)),   # packed (target, valid) int32
            ],
            out_specs=pl.BlockSpec((1, 8, 128), lambda i: (i, 0, 0)),
        ),
        compiler_params=pltpu.CompilerParams(
            dimension_semantics=("parallel",),
            vmem_limit_bytes=vmem_limit),
    )(prediction, tv)

    loss_sum = jnp.sum(partials[:, 0, 0])
    count = jnp.sum(valid.astype(jnp.float32))
    # NOTE: count == 0 yields NaN, matching PyTorch's boolean-index-then-mean.
    return loss_sum / count


def _reference(prediction, target, mask=None, *, smoothing=0.1, use_kl=False,
               ignore_index=-100):
    # pure-JAX reference mirroring the PyTorch forward (for correctness check)
    valid = target != ignore_index
    if mask is not None:
        valid = valid & mask
    pred = prediction[valid].astype(jnp.float32)
    tgt = target[valid]
    C = pred.shape[-1]
    logp = jax.nn.log_softmax(pred, axis=-1)
    dist = jnp.full((pred.shape[0], C), smoothing / (C - 1), dtype=jnp.float32)
    dist = dist.at[jnp.arange(pred.shape[0]), tgt].set(1.0 - smoothing)
    if use_kl:
        log_dist = jnp.where(dist > 0, jnp.log(jnp.where(dist > 0, dist, 1.0)), 0.0)
        return jnp.sum(dist * (log_dist - logp)) / pred.shape[0]
    return jnp.mean(jnp.sum(-dist * logp, axis=-1))


if __name__ == "__main__":
    key = jax.random.PRNGKey(0)
    k1, k2, k3, k4, k5 = jax.random.split(key, 5)

    B, C = 8, 32
    prediction = jax.random.normal(k1, (B, C), dtype=jnp.float32)
    target = jax.random.randint(k2, (B,), 0, C, dtype=jnp.int32)
    # exercise ignore_index masking on one row
    target = target.at[3].set(-100)

    # cross-entropy path
    loss = label_smoothing_loss(prediction, target, smoothing=0.1, use_kl=False)
    loss = jax.block_until_ready(loss)
    ref = _reference(prediction, target, smoothing=0.1, use_kl=False)
    assert jnp.allclose(loss, ref, atol=1e-5, rtol=1e-5), (loss, ref)

    # KL (batchmean) path
    loss_kl = label_smoothing_loss(prediction, target, smoothing=0.1, use_kl=True)
    loss_kl = jax.block_until_ready(loss_kl)
    ref_kl = _reference(prediction, target, smoothing=0.1, use_kl=True)
    assert jnp.allclose(loss_kl, ref_kl, atol=1e-5, rtol=1e-5), (loss_kl, ref_kl)

    # bf16 input path (native-dtype read, bf16 max/sub, MXU row-sum offload)
    pred_bf16 = prediction.astype(jnp.bfloat16)
    loss_bf = label_smoothing_loss(pred_bf16, target, smoothing=0.1, use_kl=False)
    loss_bf = jax.block_until_ready(loss_bf)
    ref_bf = _reference(pred_bf16.astype(jnp.float32), target, smoothing=0.1,
                        use_kl=False)
    assert jnp.allclose(loss_bf, ref_bf, atol=2e-2, rtol=2e-2), (loss_bf, ref_bf)

    # ragged multi-tile path (B not a multiple of the row tile) + explicit mask
    B2, C2 = 37, 64
    pred2 = jax.random.normal(k3, (B2, C2), dtype=jnp.float32)
    tgt2 = jax.random.randint(k4, (B2,), 0, C2, dtype=jnp.int32)
    tgt2 = tgt2.at[0].set(-100)
    mask2 = jax.random.bernoulli(k5, 0.8, (B2,))
    loss2 = label_smoothing_loss(pred2, tgt2, mask2, smoothing=0.1, use_kl=False)
    loss2 = jax.block_until_ready(loss2)
    ref2 = _reference(pred2, tgt2, mask2, smoothing=0.1, use_kl=False)
    assert jnp.allclose(loss2, ref2, atol=1e-5, rtol=1e-5), (loss2, ref2)

    # TODO(synk): dynamic row compaction (boolean indexing) has no static-shape
    # Pallas equivalent; it is realized as zero-weighting + count normalization.
    print("KERNEL_OK")
</pallas_src>

<mosaic_0001>
module attributes {stable_mosaic.version = 11 : i64} {
  func.func @_label_smoothing_kernel(%arg0: i32, %arg1: memref<8x32xf32, #tpu.memory_space<vmem>>, %arg2: memref<8x2xi32, #tpu.memory_space<vmem>>, %arg3: memref<1x8x128xf32, #tpu.memory_space<vmem>>) attributes {dimension_semantics = [#tpu.dimension_semantics<parallel>], iteration_bounds = array<i64: 1>, scalar_prefetch = 0 : i64, scratch_operands = 0 : i64, tpu.core_type = #tpu.core_type<tc>, window_params = [{transform_indices = @transform_0, window_bounds = array<i64: 8, 32>}, {transform_indices = @transform_1, window_bounds = array<i64: 8, 2>}, {transform_indices = @transform_2, window_bounds = array<i64: 1, 8, 128>}]} {
    %c0 = arith.constant 0 : index
    %c0_0 = arith.constant 0 : index
    %0 = vector.load %arg1[%c0, %c0_0] : memref<8x32xf32, #tpu.memory_space<vmem>>, vector<8x32xf32>
    %cst = arith.constant dense<0xFF800000> : vector<8xf32>
    %1 = vector.multi_reduction <maximumf>, %0, %cst [1] : vector<8x32xf32> to vector<8xf32>
    %2 = vector.shape_cast %1 : vector<8xf32> to vector<8x1xf32>
    %3 = vector.broadcast %2 : vector<8x1xf32> to vector<8x32xf32>
    %4 = arith.subf %0, %3 : vector<8x32xf32>
    %5 = math.exp %4 : vector<8x32xf32>
    %cst_1 = arith.constant dense<0.000000e+00> : vector<8xf32>
    %6 = vector.multi_reduction <add>, %5, %cst_1 [1] : vector<8x32xf32> to vector<8xf32>
    %7 = vector.shape_cast %6 : vector<8xf32> to vector<8x1xf32>
    %8 = math.log %7 : vector<8x1xf32>
    %9 = arith.addf %2, %8 : vector<8x1xf32>
    %c0_2 = arith.constant 0 : index
    %c0_3 = arith.constant 0 : index
    %10 = vector.load %arg2[%c0_2, %c0_3] : memref<8x2xi32, #tpu.memory_space<vmem>>, vector<8x2xi32>
    %11 = vector.extract_strided_slice %10 {offsets = [0, 0], sizes = [8, 1], strides = [1, 1]} : vector<8x2xi32> to vector<8x1xi32>
    %12 = vector.extract_strided_slice %10 {offsets = [0, 1], sizes = [8, 1], strides = [1, 1]} : vector<8x2xi32> to vector<8x1xi32>
    %c0_i32 = arith.constant 0 : i32
    %13 = vector.broadcast %c0_i32 : i32 to vector<8x1xi32>
    %14 = arith.cmpi sgt, %12, %13 : vector<8x1xi32>
    %15 = tpu.iota {dimensions = array<i32: 1>} : vector<8x32xi32>
    %16 = vector.broadcast %11 : vector<8x1xi32> to vector<8x32xi32>
    %17 = arith.cmpi eq, %15, %16 : vector<8x32xi32>
    %c0_i32_4 = arith.constant 0 : i32
    %18 = arith.sitofp %c0_i32_4 : i32 to f32
    %19 = vector.broadcast %18 : f32 to vector<8x32xf32>
    %20 = arith.select %17, %0, %19 : vector<8x32xi1>, vector<8x32xf32>
    %cst_5 = arith.constant dense<0.000000e+00> : vector<8xf32>
    %21 = vector.multi_reduction <add>, %20, %cst_5 [1] : vector<8x32xf32> to vector<8xf32>
    %22 = vector.shape_cast %21 : vector<8xf32> to vector<8x1xf32>
    %cst_6 = arith.constant dense<0.000000e+00> : vector<8xf32>
    %23 = vector.multi_reduction <add>, %0, %cst_6 [1] : vector<8x32xf32> to vector<8xf32>
    %24 = vector.shape_cast %23 : vector<8xf32> to vector<8x1xf32>
    %cst_7 = arith.constant 0.0032258064 : f32
    %25 = vector.broadcast %cst_7 : f32 to vector<8x1xf32>
    %26 = arith.mulf %25, %24 : vector<8x1xf32>
    %27 = arith.subf %9, %26 : vector<8x1xf32>
    %cst_8 = arith.constant 0.896774172 : f32
    %28 = vector.broadcast %cst_8 : f32 to vector<8x1xf32>
    %29 = arith.mulf %28, %22 : vector<8x1xf32>
    %30 = arith.subf %27, %29 : vector<8x1xf32>
    %cst_9 = arith.constant 0.000000e+00 : f32
    %31 = vector.broadcast %cst_9 : f32 to vector<8x1xf32>
    %32 = arith.select %14, %30, %31 : vector<8x1xi1>, vector<8x1xf32>
    %33 = vector.shape_cast %32 : vector<8x1xf32> to vector<1x8x1xf32>
    %cst_10 = arith.constant dense<0.000000e+00> : vector<1xf32>
    %34 = vector.multi_reduction <add>, %33, %cst_10 [1, 2] : vector<1x8x1xf32> to vector<1xf32>
    %35 = vector.shape_cast %34 : vector<1xf32> to vector<1x1x1xf32>
    %36 = vector.extract %35[0, 0, 0] : f32 from vector<1x1x1xf32>
    %37 = vector.broadcast %36 : f32 to vector<1x8x128xf32>
    %c0_11 = arith.constant 0 : index
    %c0_12 = arith.constant 0 : index
    %c0_13 = arith.constant 0 : index
    %38 = vector.load %arg3[%c0_11, %c0_12, %c0_13] : memref<1x8x128xf32, #tpu.memory_space<vmem>>, vector<1x8x128xf32>
    tpu.vector_store %arg3[%c0_11, %c0_12, %c0_13], %37 {strides = array<i32>} : memref<1x8x128xf32, #tpu.memory_space<vmem>>, vector<1x8x128xf32>,
    return
  }
  func.func @transform_0(%arg0: i32) -> (i32, i32) {
    %c0_i32 = arith.constant 0 : i32
    %c0_i32_0 = arith.constant 0 : i32
    return %arg0, %c0_i32 : i32, i32
  }
  func.func @transform_1(%arg0: i32) -> (i32, i32) {
    %c0_i32 = arith.constant 0 : i32
    %c0_i32_0 = arith.constant 0 : i32
    return %arg0, %c0_i32 : i32, i32
  }
  func.func @transform_2(%arg0: i32) -> (i32, i32, i32) {
    %c0_i32 = arith.constant 0 : i32
    %c0_i32_0 = arith.constant 0 : i32
    %c0_i32_1 = arith.constant 0 : i32
    return %arg0, %c0_i32, %c0_i32_0 : i32, i32, i32
  }
}

</mosaic_0001>

<llo_original>
// kernel: tpu_custom_call.1
$region0: #{tpu_custom_call.1}
  #allocation0 [shape = 'u32[]', space=smem, size = 0x4, offset = 0x4, fixed_abs, tag = 'smem constant byte address 0x4 - core index']
  #allocation1 [shape = 'u32[144,128]{1,0:T(1,128)}', space=vmem, size = 0x12000, scoped, tag = 'internal scratch']
  %s0 = inlined_call_operand.vmem [shape: f32[8,32], index: 0, kind: input, shape index: {}]
  %s1 = inlined_call_operand.vmem [shape: s32[8,2], index: 1, kind: input, shape index: {}]
  %s2 = inlined_call_operand.hbm [shape: f32[1,8,128], index: 2, kind: output, shape index: {}]
  %s3 = sld [smem:[#allocation0]]
  $region18: #{tpu_custom_call.1} parent=0
    _
  %s5 = ssub.s32 1, %s3
  %s6 = scalar_select 0, %s5, %s3
  $region1: #{tpu_custom_call.1} parent=0
    #allocation2 [shape = 'u8[4096]{0}', space=vmem, size = 0x1000, scoped, tag = 'output window, operand 0, single buffered']
    #allocation3 [shape = 's32[1]{0}', space=sflag, size = 0x4, scoped, tag = 'scoped memory for tpu_custom_call.1']
    %7 = vsyncpa [#allocation3], 0
    // Predicated region
    $region2: #{tpu_custom_call.1} parent=1 // pred_check
      _
    $region3: #{tpu_custom_call.1} parent=1 // pred_check_branch
      %9 = sbr.rel (0) target = $region5
    $region4: #{tpu_custom_call.1} parent=1 // pred_region
      _
    $region5: #{tpu_custom_call.1} parent=1 // pred_fallthru
      _
    // Predicated region
    $region6: #{tpu_custom_call.1} parent=1 // pred_check
      _
    $region7: #{tpu_custom_call.1} parent=1 // pred_check_branch
      %11 = sbr.rel (0) target = $region9
    $region8: #{tpu_custom_call.1} parent=1 // pred_region
      _
    $region9: #{tpu_custom_call.1} parent=1 // pred_fallthru
      _
    %v12 = vld [vmem:[%s0] sm:$0xff]
    %vm13 = vcmask 261120
    %v14 = vsel %vm13, %v12, -inf
    %15 = vmax.xlane.f32.xlu0 %v14
    %v16 = vpop.xlane.xlu0 %15
    %v17 = vsub.f32 %v12, %v16
    %v18 = vmul.f32 %v17, 1.442695
    %v19 = vpow.pop %v18
    %v20 = vsel %vm13, %v19, 0.0
    %21 = vadd.xlane.f32.xlu0 %v20
    %v22 = vpop.xlane.xlu0 %21
    %v23 = vlog2.pop %v22
    %v24 = vmul.f32 %v23, 0.6931472
    %v25 = vadd.f32 %v16, %v24
    %v26 = vld [vmem:[%s1] sm:$0xff]
    %vm27 = vcmp.gt.s32.totalorder %v26, 0
    %v28 = vlaneseq
    %v29 = vand.u32 %v28, 127
    %30 = vset.pattern.permute.xlu0 0
    %31 = vperm.xlu0 %30, %v26
    %v32 = vpop.permute.xlu0 %31
    %vm33 = vcmp.eq.s32.totalorder %v29, %v32
    %v34 = vsel %vm33, %v12, 0.0
    %v35 = vsel %vm13, %v34, 0.0
    %36 = vadd.xlane.f32.xlu0 %v35
    %v37 = vpop.xlane.xlu0 %36
    %v38 = vsel %vm13, %v12, 0.0
    %39 = vadd.xlane.f32.xlu0 %v38
    %v40 = vpop.xlane.xlu0 %39
    %v41 = vmul.f32 %v40, 0.0032258064
    %v42 = vsub.f32 %v25, %v41
    %v43 = vmul.f32 %v37, 0.8967742
    %v44 = vsub.f32 %v42, %v43
    %v45 = vsel %vm27, %v44, 0.0
    %47 = vrot.lane.b32.xlu0 %v45, 127
    %v48 = vpop.permute.xlu0 %47
    %vm50 = vcmask 7168
    %v51 = vsel %vm50, %v48, 0.0
    %52 = vadd.xlane.f32.xlu0 %v51
    %v53 = vpop.xlane.xlu0 %52
    %v54 = vrot.slane %v53, 4
    %v55 = vadd.f32 %v53, %v54
    %v56 = vrot.slane %v55, 2
    %v57 = vadd.f32 %v55, %v56
    %v58 = vrot.slane %v57, 1
    %v59 = vadd.f32 %v57, %v58
    %s60 = vtos %v59
    %v61 = vstv %s60
    %62 = vst [vmem:[#allocation2] sm:$0xff] %v61
    // Predicated region
    $region10: #{tpu_custom_call.1} parent=1 // pred_check
      _
    $region11: #{tpu_custom_call.1} parent=1 // pred_check_branch
      %64 = sbr.rel (0) target = $region13
    $region12: #{tpu_custom_call.1} parent=1 // pred_region
      %s66 = ssub.s32 128, 128
      %67 = vsyncadd [#allocation3], %s66
      %s69 = sshll.u32 [#allocation2], 4
      %s70 = int_to_ptr.vmem [resolvable:$true] %s69
      %72 = dma.vmem_to_hbm [thread:$0]  %s70, 128, %s2, [#allocation3]
    $region13: #{tpu_custom_call.1} parent=1 // pred_fallthru
      _
    // Predicated region
    $region14: #{tpu_custom_call.1} parent=1 // pred_check
      _
    $region15: #{tpu_custom_call.1} parent=1 // pred_check_branch
      %74 = sbr.rel (0) target = $region17
    $region16: #{tpu_custom_call.1} parent=1 // pred_region
      %75 = dma.done [#allocation3], 128
    $region17: #{tpu_custom_call.1} parent=1 // pred_fallthru
      _
    %76 = vsyncpa [#allocation3], 1

</llo_original>
